<compile_context>
chip_gen: v5e
topology: v5e:2x2
jax: 0.10.0
libtpu: 0.0.40
codegen_flags: <defaults>
</compile_context>

<pallas_src>
import numpy as np
import jax
import jax.numpy as jnp
from jax.experimental import pallas as pl
from jax.experimental.pallas import tpu as pltpu


# ----------------------------- small helpers -----------------------------

def inverse_softplus(x, beta=1.0, threshold=20.0):
    if x >= threshold:
        return float(x)
    return float(np.log(np.exp(beta * x) - 1.0) / beta)


def _softplus(x):
    # F.softplus(x, beta=1, threshold=20). inf in the unselected branch of where is benign.
    return jnp.where(x > 20.0, x, jnp.log1p(jnp.exp(x)))


def _round_up(x, m):
    return (x + m - 1) // m * m


def _pad2d(a, rows, cols, dtype):
    a = jnp.asarray(a, dtype)
    r, c = a.shape
    if r == rows and c == cols:
        return a
    return jnp.pad(a, ((0, rows - r), (0, cols - c)))


def _vmem_limit(bytes_needed):
    # 48 MiB cap keeps headroom on v7x (64 MiB physical) while raising the default on v5e/v6e.
    return int(min(48 * 1024 * 1024, max(2 * bytes_needed, 32 * 1024 * 1024)))


# ----------------------------- Pallas kernels -----------------------------

def _make_sample_kernel(prior_mu, prior_sigma, n_in, n_out, n_in_pad, n_out_pad):
    prior_mu = float(prior_mu)
    prior_sigma = float(prior_sigma)
    log_q_sigma = float(np.log(prior_sigma))
    inv_2var = float(1.0 / (2.0 * prior_sigma ** 2))
    pad_k = n_in_pad > n_in      # trace-time: only build iota masks if padding exists
    pad_n = n_out_pad > n_out

    def kl_elems(p_mu, p_sigma):
        # per-element KL_gaussian(p_mu, p_sigma, prior_mu, prior_sigma)
        return (log_q_sigma - jnp.log(p_sigma)
                + (p_sigma * p_sigma + (p_mu - prior_mu) ** 2) * inv_2var
                - 0.5)

    def kernel(x_ref, wmu_ref, wp_ref, epsw_ref, bmu_ref, bp_ref, epsb_ref,
               out_ref, klw_ref, klb_ref, acc_ref, kl_sc, stdb_sc):
        i = pl.program_id(0)          # batch tile   (parallel)
        j = pl.program_id(1)          # n_out tile   (parallel)
        k = pl.program_id(2)          # n_in tile    (reduction, innermost)
        nk = pl.num_programs(2)
        tk, tn = wmu_ref.shape

        @pl.when(k == 0)
        def _init():
            acc_ref[...] = jnp.zeros_like(acc_ref)
            kl_sc[0] = jnp.float32(0.0)
            kl_sc[1] = jnp.float32(0.0)
            stdb_sc[...] = 1e-6 + _softplus(bp_ref[...])   # once per (i, j) tile

        # bf16 HBM streams, upcast once to f32 for sampling / KL math.
        w_mu = wmu_ref[...].astype(jnp.float32)                        # (tk, tn)
        std_w = 1e-6 + _softplus(wp_ref[...].astype(jnp.float32))
        w = w_mu + std_w * epsw_ref[...].astype(jnp.float32)

        # bf16 MXU inputs, f32 accumulation.
        acc_ref[...] += jnp.dot(x_ref[...], w.astype(jnp.bfloat16),
                                preferred_element_type=jnp.float32)

        # KL terms: exactly once per weight tile (batch-tile 0 only); mask only padded dims.
        @pl.when(i == 0)
        def _kl():
            kl_w = kl_elems(w_mu, std_w)
            if pad_k or pad_n:
                mask = None
                if pad_k:
                    row = jax.lax.broadcasted_iota(jnp.int32, (tk, tn), 0) + k * tk
                    mask = row < n_in
                if pad_n:
                    col = jax.lax.broadcasted_iota(jnp.int32, (tk, tn), 1) + j * tn
                    mask = (col < n_out) if mask is None else (mask & (col < n_out))
                kl_w = jnp.where(mask, kl_w, 0.0)
            kl_sc[0] += jnp.sum(kl_w)

            @pl.when(k == 0)
            def _kl_bias():
                kl_b = kl_elems(bmu_ref[...], stdb_sc[...])
                if pad_n:
                    colb = jax.lax.broadcasted_iota(jnp.int32, (1, tn), 1) + j * tn
                    kl_b = jnp.where(colb < n_out, kl_b, 0.0)
                kl_sc[1] += jnp.sum(kl_b)

        @pl.when(k == nk - 1)
        def _finalize():
            b = bmu_ref[...] + stdb_sc[...] * epsb_ref[...]              # (1, tn) f32
            out_ref[...] = (acc_ref[...] + b).astype(out_ref.dtype)
            klw_ref[0, 0] = kl_sc[0]
            klb_ref[0, 0] = kl_sc[1]

    return kernel


def _eval_kernel(x_ref, wmu_ref, bmu_ref, out_ref, acc_ref):
    k = pl.program_id(2)

    @pl.when(k == 0)
    def _init():
        acc_ref[...] = jnp.zeros_like(acc_ref)

    # x_ref / wmu_ref are already bf16 (pre-cast in the wrapper: halves HBM traffic).
    acc_ref[...] += jnp.dot(x_ref[...], wmu_ref[...],
                            preferred_element_type=jnp.float32)

    @pl.when(k == pl.num_programs(2) - 1)
    def _finalize():
        out_ref[...] = (acc_ref[...] + bmu_ref[...]).astype(out_ref.dtype)


# ----------------------------- wrapper (the "module") -----------------------------

class BayesLinearNormalqPallas:
    def __init__(self, n_in, n_out, prior_mu=0.0, prior_sigma=0.1):
        self.n_in = n_in
        self.n_out = n_out
        self.prior_mu = prior_mu
        self.prior_sigma = prior_sigma
        # Deterministic init mirroring the PyTorch __init__:
        self.W_mu = jnp.zeros((n_in, n_out), jnp.float32)
        self.W_p = jnp.full((n_in, n_out),
                            inverse_softplus(np.sqrt(2.0 / n_in)), jnp.float32)
        self.b_mu = jnp.zeros((n_out,), jnp.float32)
        self.b_p = jnp.full((n_out,), inverse_softplus(1e-6), jnp.float32)

    def forward(self, X, eps_W=None, eps_b=None, key=None, sample=True, training=True,
                tm=1024, tn=512, tk=1024):
        B = X.shape[0]

        # (16,128)-aligned tiles (bf16 sublane packing); tm covers the whole padded batch when it
        # fits so weights / EUP-heavy sampling are not redone per batch tile.
        B16 = _round_up(B, 16)
        N128 = _round_up(self.n_out, 128)
        K128 = _round_up(self.n_in, 128)
        tm = _round_up(min(tm, B16), 16)
        tn = _round_up(min(tn, N128), 128)
        tk = _round_up(min(tk, K128), 128)

        # v7x has 2 TensorCores sharded over the "parallel" grid axes: ensure >=2 parallel tiles
        # when the problem allows it (no effect on single-TC v5e/v6e).
        if pl.cdiv(B, tm) * pl.cdiv(self.n_out, tn) < 2:
            if N128 >= 256:
                tn = _round_up(N128 // 2, 128)
            elif B16 >= 32:
                tm = _round_up(B16 // 2, 16)

        B_pad = _round_up(B, tm)
        N_pad = _round_up(self.n_out, tn)
        K_pad = _round_up(self.n_in, tk)
        nb, nj, nk = B_pad // tm, N_pad // tn, K_pad // tk
        grid = (nb, nj, nk)

        x_spec = pl.BlockSpec((tm, tk), lambda i, j, k: (i, k))
        w_spec = pl.BlockSpec((tk, tn), lambda i, j, k: (k, j))
        b_spec = pl.BlockSpec((1, tn), lambda i, j, k: (0, j))
        o_spec = pl.BlockSpec((tm, tn), lambda i, j, k: (i, j))
        kl_spec = pl.BlockSpec((1, 1), lambda i, j, k: (i, j),
                               memory_space=pltpu.MemorySpace.SMEM)

        # bf16 HBM streams for the big operands (halves DMA bytes on the HBM-bound path).
        Xp = _pad2d(X, B_pad, K_pad, jnp.bfloat16)
        Wmu_bf = _pad2d(self.W_mu, K_pad, N_pad, jnp.bfloat16)
        bmu = _pad2d(jnp.asarray(self.b_mu, jnp.float32).reshape(1, -1), 1, N_pad, jnp.float32)

        # ---------------------- deterministic eval path (sample=False, eval) ----------------------
        if (not training) and (not sample):
            vmem = (2 * tk * tn * 2 + 2 * tm * tk * 2 + 2 * tm * tn * 4
                    + tm * tn * 4 + 2 * tn * 4)
            out = pl.pallas_call(
                _eval_kernel,
                grid=grid,
                in_specs=[x_spec, w_spec, b_spec],
                out_specs=o_spec,
                out_shape=jax.ShapeDtypeStruct((B_pad, N_pad), jnp.float32),
                scratch_shapes=[pltpu.VMEM((tm, tn), jnp.float32)],
                compiler_params=pltpu.CompilerParams(
                    dimension_semantics=("parallel", "parallel", "arbitrary"),
                    vmem_limit_bytes=_vmem_limit(vmem)),
                cost_estimate=pl.CostEstimate(
                    flops=2 * B_pad * K_pad * N_pad,
                    transcendentals=0,
                    bytes_accessed=2 * (K_pad * N_pad + B_pad * K_pad) + 4 * B_pad * N_pad),
            )(Xp, Wmu_bf, bmu)
            return out[:B, :self.n_out], jnp.float32(0.0), jnp.float32(0.0)

        # ---------------------------- sampled ("training") path ----------------------------
        if key is None:
            key = jax.random.PRNGKey(0)
        k_w, k_b = jax.random.split(key, 2)
        if eps_W is None:
            # TODO(synk): in-kernel pltpu.prng_seed/stateful_normal would remove this weight-sized
            # HBM stream, but those primitives don't lower in interpret/CPU mode, so host-generated
            # noise is streamed as bf16 instead.
            eps_W = jax.random.normal(k_w, (self.n_in, self.n_out), jnp.float32)
        if eps_b is None:
            eps_b = jax.random.normal(k_b, (self.n_out,), jnp.float32)

        Wp_bf = _pad2d(self.W_p, K_pad, N_pad, jnp.bfloat16)
        eW_bf = _pad2d(eps_W, K_pad, N_pad, jnp.bfloat16)
        bp = _pad2d(jnp.asarray(self.b_p, jnp.float32).reshape(1, -1), 1, N_pad, jnp.float32)
        ebp = _pad2d(jnp.asarray(eps_b, jnp.float32).reshape(1, -1), 1, N_pad, jnp.float32)

        kernel = _make_sample_kernel(self.prior_mu, self.prior_sigma,
                                     self.n_in, self.n_out, K_pad, N_pad)

        vmem = (2 * 3 * tk * tn * 2      # 3 bf16 weight streams, double-buffered
                + 2 * tm * tk * 2        # bf16 X tiles
                + 2 * tm * tn * 4        # f32 out tiles
                + tm * tn * 4            # f32 accumulator
                + tn * 4                 # std_b scratch
                + 3 * 2 * tn * 4)        # bias tiles

        out, klw_parts, klb_parts = pl.pallas_call(
            kernel,
            grid=grid,
            in_specs=[x_spec, w_spec, w_spec, w_spec, b_spec, b_spec, b_spec],
            out_specs=(o_spec, kl_spec, kl_spec),
            out_shape=(jax.ShapeDtypeStruct((B_pad, N_pad), jnp.float32),
                       jax.ShapeDtypeStruct((nb, nj), jnp.float32),
                       jax.ShapeDtypeStruct((nb, nj), jnp.float32)),
            scratch_shapes=[pltpu.VMEM((tm, tn), jnp.float32),
                            pltpu.SMEM((2,), jnp.float32),
                            pltpu.VMEM((1, tn), jnp.float32)],
            compiler_params=pltpu.CompilerParams(
                dimension_semantics=("parallel", "parallel", "arbitrary"),
                vmem_limit_bytes=_vmem_limit(vmem)),
            cost_estimate=pl.CostEstimate(
                flops=2 * B_pad * K_pad * N_pad,
                transcendentals=3 * K_pad * N_pad,
                bytes_accessed=(2 * 3 * K_pad * N_pad + 2 * B_pad * K_pad
                                + 4 * B_pad * N_pad)),
        )(Xp, Wmu_bf, Wp_bf, eW_bf, bmu, bp, ebp)

        return out[:B, :self.n_out], jnp.sum(klw_parts), jnp.sum(klb_parts)


# ----------------------------- pure-JAX reference -----------------------------

def _reference(layer, X, eps_W, eps_b):
    # Mirror the kernel's bf16 streams (W_mu, W_p, eps_W, X) and f32 math after upcast.
    f32 = jnp.float32
    wmu = jnp.asarray(layer.W_mu).astype(jnp.bfloat16).astype(f32)
    wp = jnp.asarray(layer.W_p).astype(jnp.bfloat16).astype(f32)
    ew = jnp.asarray(eps_W).astype(jnp.bfloat16).astype(f32)
    std_w = 1e-6 + jax.nn.softplus(wp)
    std_b = 1e-6 + jax.nn.softplus(jnp.asarray(layer.b_p, f32))
    W = wmu + std_w * ew
    b = jnp.asarray(layer.b_mu, f32) + std_b * jnp.asarray(eps_b, f32)
    out = jnp.dot(X.astype(jnp.bfloat16), W.astype(jnp.bfloat16),
                  preferred_element_type=f32) + b[None, :]

    def kl(p_mu, p_sigma):
        return jnp.sum(jnp.log(layer.prior_sigma / p_sigma)
                       + (p_sigma ** 2 + (p_mu - layer.prior_mu) ** 2)
                       / (2.0 * layer.prior_sigma ** 2)
                       - 0.5)

    return out, kl(wmu, std_w), kl(jnp.asarray(layer.b_mu, f32), std_b)


if __name__ == "__main__":
    key = jax.random.PRNGKey(0)

    # ---------------- test 1: small single-tile shapes, caller-supplied eps ----------------
    n_in, n_out, batch = 32, 32, 8
    layer = BayesLinearNormalqPallas(n_in, n_out, prior_mu=0.0, prior_sigma=0.1)
    key, kx, kw, kb, kwm, kwp, kbm, kbp = jax.random.split(key, 8)
    layer.W_mu = 0.3 * jax.random.normal(kwm, (n_in, n_out), jnp.float32)
    layer.W_p = 0.5 * jax.random.normal(kwp, (n_in, n_out), jnp.float32)
    layer.b_mu = 0.3 * jax.random.normal(kbm, (n_out,), jnp.float32)
    layer.b_p = 0.5 * jax.random.normal(kbp, (n_out,), jnp.float32)

    X = jax.random.normal(kx, (batch, n_in), jnp.float32)
    eps_W = jax.random.normal(kw, (n_in, n_out), jnp.float32)
    eps_b = jax.random.normal(kb, (n_out,), jnp.float32)

    out, kl_w, kl_b = layer.forward(X, eps_W=eps_W, eps_b=eps_b, sample=True, training=True)
    jax.block_until_ready(out)
    ref_out, ref_klw, ref_klb = _reference(layer, X, eps_W, eps_b)
    assert out.shape == (batch, n_out)
    assert jnp.allclose(out, ref_out, atol=2e-2, rtol=2e-2)
    assert jnp.allclose(kl_w, ref_klw, rtol=1e-3, atol=1e-1)
    assert jnp.allclose(kl_b, ref_klb, rtol=1e-3, atol=1e-2)

    # eval branch (sample=False, not training)
    out_eval, _, _ = layer.forward(X, sample=False, training=False)
    jax.block_until_ready(out_eval)
    ref_eval = jnp.dot(X.astype(jnp.bfloat16), layer.W_mu.astype(jnp.bfloat16),
                       preferred_element_type=jnp.float32) + layer.b_mu[None, :]
    assert jnp.allclose(out_eval, ref_eval, atol=2e-2, rtol=2e-2)

    # ---------------- test 2: wrapper-generated noise (original-module semantics) ----------
    key, ks1 = jax.random.split(key)
    out_s, kl_w_s, kl_b_s = layer.forward(X, key=ks1, sample=True, training=True)
    jax.block_until_ready(out_s)
    assert out_s.shape == (batch, n_out)
    assert bool(jnp.all(jnp.isfinite(out_s)))
    # KL terms are independent of the sampled noise -> must match the reference.
    assert jnp.allclose(kl_w_s, ref_klw, rtol=1e-3, atol=1e-1)
    assert jnp.allclose(kl_b_s, ref_klb, rtol=1e-3, atol=1e-2)

    # ---------------- test 3: multi-tile grid with padding (K-reduction + KL masking) -------
    n_in2, n_out2, batch2 = 300, 200, 24
    layer2 = BayesLinearNormalqPallas(n_in2, n_out2, prior_mu=0.0, prior_sigma=0.1)
    key, kx2, kw2, kb2, km2, kp2, kbm2, kbp2, ks2 = jax.random.split(key, 9)
    layer2.W_mu = 0.2 * jax.random.normal(km2, (n_in2, n_out2), jnp.float32)
    layer2.W_p = 0.5 * jax.random.normal(kp2, (n_in2, n_out2), jnp.float32)
    layer2.b_mu = 0.2 * jax.random.normal(kbm2, (n_out2,), jnp.float32)
    layer2.b_p = 0.5 * jax.random.normal(kbp2, (n_out2,), jnp.float32)
    X2 = jax.random.normal(kx2, (batch2, n_in2), jnp.float32)
    eW2 = jax.random.normal(kw2, (n_in2, n_out2), jnp.float32)
    eb2 = jax.random.normal(kb2, (n_out2,), jnp.float32)

    out2, klw2, klb2 = layer2.forward(X2, eps_W=eW2, eps_b=eb2, sample=True, training=True,
                                      tm=16, tn=128, tk=128)
    jax.block_until_ready(out2)
    r_out2, r_klw2, r_klb2 = _reference(layer2, X2, eW2, eb2)
    assert jnp.allclose(out2, r_out2, atol=3e-2, rtol=3e-2)
    assert jnp.allclose(klw2, r_klw2, rtol=1e-3, atol=5.0)
    assert jnp.allclose(klb2, r_klb2, rtol=1e-3, atol=1e-1)

    # same shapes, wrapper-generated noise (multi-tile grid + masking, noise path)
    out2s, klw2s, klb2s = layer2.forward(X2, key=ks2, sample=True, training=True,
                                         tm=16, tn=128, tk=128)
    jax.block_until_ready(out2s)
    assert bool(jnp.all(jnp.isfinite(out2s)))
    assert jnp.allclose(klw2s, r_klw2, rtol=1e-3, atol=5.0)
    assert jnp.allclose(klb2s, r_klb2, rtol=1e-3, atol=1e-1)

    print("KERNEL_OK")
</pallas_src>

<mosaic_0001>
module attributes {stable_mosaic.version = 11 : i64} {
  func.func @kernel(%arg0: i32, %arg1: i32, %arg2: i32, %arg3: memref<16x128xbf16, #tpu.memory_space<vmem>>, %arg4: memref<128x128xbf16, #tpu.memory_space<vmem>>, %arg5: memref<128x128xbf16, #tpu.memory_space<vmem>>, %arg6: memref<128x128xbf16, #tpu.memory_space<vmem>>, %arg7: memref<1x128xf32, #tpu.memory_space<vmem>>, %arg8: memref<1x128xf32, #tpu.memory_space<vmem>>, %arg9: memref<1x128xf32, #tpu.memory_space<vmem>>, %arg10: memref<16x128xf32, #tpu.memory_space<vmem>>, %arg11: memref<1x1xf32, #tpu.memory_space<smem>>, %arg12: memref<1x1xf32, #tpu.memory_space<smem>>, %arg13: memref<16x128xf32, #tpu.memory_space<vmem>>, %arg14: memref<2xf32, #tpu.memory_space<smem>>, %arg15: memref<1x128xf32, #tpu.memory_space<vmem>>) attributes {dimension_semantics = [#tpu.dimension_semantics<parallel>, #tpu.dimension_semantics<parallel>, #tpu.dimension_semantics<arbitrary>], iteration_bounds = array<i64: 1, 1, 1>, scalar_prefetch = 0 : i64, scratch_operands = 3 : i64, tpu.core_type = #tpu.core_type<tc>, window_params = [{transform_indices = @transform_0, window_bounds = array<i64: 16, 128>}, {transform_indices = @transform_1, window_bounds = array<i64: 128, 128>}, {transform_indices = @transform_2, window_bounds = array<i64: 128, 128>}, {transform_indices = @transform_3, window_bounds = array<i64: 128, 128>}, {transform_indices = @transform_4, window_bounds = array<i64: 1, 128>}, {transform_indices = @transform_5, window_bounds = array<i64: 1, 128>}, {transform_indices = @transform_6, window_bounds = array<i64: 1, 128>}, {transform_indices = @transform_7, window_bounds = array<i64: 16, 128>}, {transform_indices = @transform_8, window_bounds = array<i64: 1, 1>}, {transform_indices = @transform_9, window_bounds = array<i64: 1, 1>}]} {
    %c0_i32 = arith.constant 0 : i32
    %0 = arith.cmpi eq, %arg2, %c0_i32 : i32
    %1 = arith.extui %0 : i1 to i32
    %c0_i32_0 = arith.constant 0 : i32
    %2 = arith.cmpi ne, %1, %c0_i32_0 : i32
    scf.if %2 {
      %cst_18 = arith.constant 0.000000e+00 : f32
      %30 = vector.broadcast %cst_18 : f32 to vector<16x128xf32>
      %c0_19 = arith.constant 0 : index
      %c0_20 = arith.constant 0 : index
      %31 = vector.load %arg13[%c0_19, %c0_20] : memref<16x128xf32, #tpu.memory_space<vmem>>, vector<16x128xf32>
      tpu.vector_store %arg13[%c0_19, %c0_20], %30 {strides = array<i32>} : memref<16x128xf32, #tpu.memory_space<vmem>>, vector<16x128xf32>,
      %cst_21 = arith.constant 0.000000e+00 : f32
      %c0_22 = arith.constant 0 : index
      %32 = memref.load %arg14[%c0_22] : memref<2xf32, #tpu.memory_space<smem>>
      memref.store %cst_21, %arg14[%c0_22] : memref<2xf32, #tpu.memory_space<smem>>
      %cst_23 = arith.constant 0.000000e+00 : f32
      %c1 = arith.constant 1 : index
      %33 = memref.load %arg14[%c1] : memref<2xf32, #tpu.memory_space<smem>>
      memref.store %cst_23, %arg14[%c1] : memref<2xf32, #tpu.memory_space<smem>>
      %c0_24 = arith.constant 0 : index
      %c0_25 = arith.constant 0 : index
      %34 = vector.load %arg8[%c0_24, %c0_25] : memref<1x128xf32, #tpu.memory_space<vmem>>, vector<1x128xf32>
      %cst_26 = arith.constant 2.000000e+01 : f32
      %35 = vector.broadcast %cst_26 : f32 to vector<1x128xf32>
      %36 = arith.cmpf ogt, %34, %35 : vector<1x128xf32>
      %37 = math.exp %34 : vector<1x128xf32>
      %38 = math.log1p %37 : vector<1x128xf32>
      %39 = arith.select %36, %34, %38 : vector<1x128xi1>, vector<1x128xf32>
      %cst_27 = arith.constant 9.99999997E-7 : f32
      %40 = vector.broadcast %cst_27 : f32 to vector<1x128xf32>
      %41 = arith.addf %40, %39 : vector<1x128xf32>
      %c0_28 = arith.constant 0 : index
      %c0_29 = arith.constant 0 : index
      %42 = vector.load %arg15[%c0_28, %c0_29] : memref<1x128xf32, #tpu.memory_space<vmem>>, vector<1x128xf32>
      tpu.vector_store %arg15[%c0_28, %c0_29], %41 {strides = array<i32>} : memref<1x128xf32, #tpu.memory_space<vmem>>, vector<1x128xf32>,
    } else {
    }
    %c0 = arith.constant 0 : index
    %c0_1 = arith.constant 0 : index
    %3 = vector.load %arg4[%c0, %c0_1] : memref<128x128xbf16, #tpu.memory_space<vmem>>, vector<128x128xbf16>
    %4 = arith.extf %3 : vector<128x128xbf16> to vector<128x128xf32>
    %c0_2 = arith.constant 0 : index
    %c0_3 = arith.constant 0 : index
    %5 = vector.load %arg5[%c0_2, %c0_3] : memref<128x128xbf16, #tpu.memory_space<vmem>>, vector<128x128xbf16>
    %6 = arith.extf %5 : vector<128x128xbf16> to vector<128x128xf32>
    %cst = arith.constant 2.000000e+01 : f32
    %7 = vector.broadcast %cst : f32 to vector<128x128xf32>
    %8 = arith.cmpf ogt, %6, %7 : vector<128x128xf32>
    %9 = math.exp %6 : vector<128x128xf32>
    %10 = math.log1p %9 : vector<128x128xf32>
    %11 = arith.select %8, %6, %10 : vector<128x128xi1>, vector<128x128xf32>
    %cst_4 = arith.constant 9.99999997E-7 : f32
    %12 = vector.broadcast %cst_4 : f32 to vector<128x128xf32>
    %13 = arith.addf %12, %11 : vector<128x128xf32>
    %c0_5 = arith.constant 0 : index
    %c0_6 = arith.constant 0 : index
    %14 = vector.load %arg6[%c0_5, %c0_6] : memref<128x128xbf16, #tpu.memory_space<vmem>>, vector<128x128xbf16>
    %15 = arith.extf %14 : vector<128x128xbf16> to vector<128x128xf32>
    %16 = arith.mulf %13, %15 : vector<128x128xf32>
    %17 = arith.addf %4, %16 : vector<128x128xf32>
    %c0_7 = arith.constant 0 : index
    %c0_8 = arith.constant 0 : index
    %18 = vector.load %arg13[%c0_7, %c0_8] : memref<16x128xf32, #tpu.memory_space<vmem>>, vector<16x128xf32>
    %c0_9 = arith.constant 0 : index
    %c0_10 = arith.constant 0 : index
    %19 = vector.load %arg3[%c0_9, %c0_10] : memref<16x128xbf16, #tpu.memory_space<vmem>>, vector<16x128xbf16>
    %20 = arith.truncf %17 : vector<128x128xf32> to vector<128x128xbf16>
    %cst_11 = arith.constant dense<0.000000e+00> : vector<16x128xf32>
    %21 = tpu.matmul %19, %20, %cst_11 {dimension_numbers = #tpu.dot_dimension_numbers<[1], [0], [0], [1], [0, 0, 1, 1], [], []>} : vector<16x128xbf16>, vector<128x128xbf16>, vector<16x128xf32> -> vector<16x128xf32>
    %22 = arith.addf %18, %21 : vector<16x128xf32>
    %c0_12 = arith.constant 0 : index
    %c0_13 = arith.constant 0 : index
    %23 = vector.load %arg13[%c0_12, %c0_13] : memref<16x128xf32, #tpu.memory_space<vmem>>, vector<16x128xf32>
    tpu.vector_store %arg13[%c0_12, %c0_13], %22 {strides = array<i32>} : memref<16x128xf32, #tpu.memory_space<vmem>>, vector<16x128xf32>,
    %c0_i32_14 = arith.constant 0 : i32
    %24 = arith.cmpi eq, %arg0, %c0_i32_14 : i32
    %25 = arith.extui %24 : i1 to i32
    %c0_i32_15 = arith.constant 0 : i32
    %26 = arith.cmpi ne, %25, %c0_i32_15 : i32
    scf.if %26 {
      %30 = math.log %13 : vector<128x128xf32>
      %cst_18 = arith.constant -2.30258512 : f32
      %31 = vector.broadcast %cst_18 : f32 to vector<128x128xf32>
      %32 = arith.subf %31, %30 : vector<128x128xf32>
      %33 = arith.mulf %13, %13 : vector<128x128xf32>
      %cst_19 = arith.constant 0.000000e+00 : f32
      %34 = vector.broadcast %cst_19 : f32 to vector<128x128xf32>
      %35 = arith.subf %4, %34 : vector<128x128xf32>
      %36 = arith.mulf %35, %35 : vector<128x128xf32>
      %37 = arith.addf %33, %36 : vector<128x128xf32>
      %cst_20 = arith.constant 5.000000e+01 : f32
      %38 = vector.broadcast %cst_20 : f32 to vector<128x128xf32>
      %39 = arith.mulf %37, %38 : vector<128x128xf32>
      %40 = arith.addf %32, %39 : vector<128x128xf32>
      %cst_21 = arith.constant 5.000000e-01 : f32
      %41 = vector.broadcast %cst_21 : f32 to vector<128x128xf32>
      %42 = arith.subf %40, %41 : vector<128x128xf32>
      %43 = tpu.iota {dimensions = array<i32: 0>} : vector<128x128xi32>
      %c128_i32 = arith.constant 128 : i32
      %44 = arith.muli %arg2, %c128_i32 : i32
      %45 = vector.broadcast %44 : i32 to vector<128x128xi32>
      %46 = arith.addi %43, %45 : vector<128x128xi32>
      %c32_i32 = arith.constant 32 : i32
      %47 = vector.broadcast %c32_i32 : i32 to vector<128x128xi32>
      %48 = arith.cmpi slt, %46, %47 : vector<128x128xi32>
      %49 = tpu.iota {dimensions = array<i32: 1>} : vector<128x128xi32>
      %c128_i32_22 = arith.constant 128 : i32
      %50 = arith.muli %arg1, %c128_i32_22 : i32
      %51 = vector.broadcast %50 : i32 to vector<128x128xi32>
      %52 = arith.addi %49, %51 : vector<128x128xi32>
      %c32_i32_23 = arith.constant 32 : i32
      %53 = vector.broadcast %c32_i32_23 : i32 to vector<128x128xi32>
      %54 = arith.cmpi slt, %52, %53 : vector<128x128xi32>
      %55 = arith.andi %48, %54 : vector<128x128xi1>
      %cst_24 = arith.constant 0.000000e+00 : f32
      %56 = vector.broadcast %cst_24 : f32 to vector<128x128xf32>
      %57 = arith.select %55, %42, %56 : vector<128x128xi1>, vector<128x128xf32>
      %c0_25 = arith.constant 0 : index
      %58 = memref.load %arg14[%c0_25] : memref<2xf32, #tpu.memory_space<smem>>
      %59 = vector.shape_cast %57 : vector<128x128xf32> to vector<1x128x128xf32>
      %cst_26 = arith.constant dense<0.000000e+00> : vector<1xf32>
      %60 = vector.multi_reduction <add>, %59, %cst_26 [1, 2] : vector<1x128x128xf32> to vector<1xf32>
      %61 = vector.shape_cast %60 : vector<1xf32> to vector<1x1x1xf32>
      %62 = vector.extract %61[0, 0, 0] : f32 from vector<1x1x1xf32>
      %63 = arith.addf %58, %62 : f32
      %c0_27 = arith.constant 0 : index
      %64 = memref.load %arg14[%c0_27] : memref<2xf32, #tpu.memory_space<smem>>
      memref.store %63, %arg14[%c0_27] : memref<2xf32, #tpu.memory_space<smem>>
      %c0_i32_28 = arith.constant 0 : i32
      %65 = arith.cmpi eq, %arg2, %c0_i32_28 : i32
      %66 = arith.extui %65 : i1 to i32
      %c0_i32_29 = arith.constant 0 : i32
      %67 = arith.cmpi ne, %66, %c0_i32_29 : i32
      scf.if %67 {
        %c0_30 = arith.constant 0 : index
        %c0_31 = arith.constant 0 : index
        %68 = vector.load %arg7[%c0_30, %c0_31] : memref<1x128xf32, #tpu.memory_space<vmem>>, vector<1x128xf32>
        %c0_32 = arith.constant 0 : index
        %c0_33 = arith.constant 0 : index
        %69 = vector.load %arg15[%c0_32, %c0_33] : memref<1x128xf32, #tpu.memory_space<vmem>>, vector<1x128xf32>
        %70 = math.log %69 : vector<1x128xf32>
        %cst_34 = arith.constant -2.30258512 : f32
        %71 = vector.broadcast %cst_34 : f32 to vector<1x128xf32>
        %72 = arith.subf %71, %70 : vector<1x128xf32>
        %73 = arith.mulf %69, %69 : vector<1x128xf32>
        %cst_35 = arith.constant 0.000000e+00 : f32
        %74 = vector.broadcast %cst_35 : f32 to vector<1x128xf32>
        %75 = arith.subf %68, %74 : vector<1x128xf32>
        %76 = arith.mulf %75, %75 : vector<1x128xf32>
        %77 = arith.addf %73, %76 : vector<1x128xf32>
        %cst_36 = arith.constant 5.000000e+01 : f32
        %78 = vector.broadcast %cst_36 : f32 to vector<1x128xf32>
        %79 = arith.mulf %77, %78 : vector<1x128xf32>
        %80 = arith.addf %72, %79 : vector<1x128xf32>
        %cst_37 = arith.constant 5.000000e-01 : f32
        %81 = vector.broadcast %cst_37 : f32 to vector<1x128xf32>
        %82 = arith.subf %80, %81 : vector<1x128xf32>
        %83 = tpu.iota {dimensions = array<i32: 1>} : vector<1x128xi32>
        %c128_i32_38 = arith.constant 128 : i32
        %84 = arith.muli %arg1, %c128_i32_38 : i32
        %85 = vector.broadcast %84 : i32 to vector<1x128xi32>
        %86 = arith.addi %83, %85 : vector<1x128xi32>
        %c32_i32_39 = arith.constant 32 : i32
        %87 = vector.broadcast %c32_i32_39 : i32 to vector<1x128xi32>
        %88 = arith.cmpi slt, %86, %87 : vector<1x128xi32>
        %cst_40 = arith.constant 0.000000e+00 : f32
        %89 = vector.broadcast %cst_40 : f32 to vector<1x128xf32>
        %90 = arith.select %88, %82, %89 : vector<1x128xi1>, vector<1x128xf32>
        %c1 = arith.constant 1 : index
        %91 = memref.load %arg14[%c1] : memref<2xf32, #tpu.memory_space<smem>>
        %92 = vector.shape_cast %90 : vector<1x128xf32> to vector<1x1x128xf32>
        %cst_41 = arith.constant dense<0.000000e+00> : vector<1xf32>
        %93 = vector.multi_reduction <add>, %92, %cst_41 [1, 2] : vector<1x1x128xf32> to vector<1xf32>
        %94 = vector.shape_cast %93 : vector<1xf32> to vector<1x1x1xf32>
        %95 = vector.extract %94[0, 0, 0] : f32 from vector<1x1x1xf32>
        %96 = arith.addf %91, %95 : f32
        %c1_42 = arith.constant 1 : index
        %97 = memref.load %arg14[%c1_42] : memref<2xf32, #tpu.memory_space<smem>>
        memref.store %96, %arg14[%c1_42] : memref<2xf32, #tpu.memory_space<smem>>
      } else {
      }
    } else {
    }
    %c0_i32_16 = arith.constant 0 : i32
    %27 = arith.cmpi eq, %arg2, %c0_i32_16 : i32
    %28 = arith.extui %27 : i1 to i32
    %c0_i32_17 = arith.constant 0 : i32
    %29 = arith.cmpi ne, %28, %c0_i32_17 : i32
    scf.if %29 {
      %c0_18 = arith.constant 0 : index
      %c0_19 = arith.constant 0 : index
      %30 = vector.load %arg7[%c0_18, %c0_19] : memref<1x128xf32, #tpu.memory_space<vmem>>, vector<1x128xf32>
      %c0_20 = arith.constant 0 : index
      %c0_21 = arith.constant 0 : index
      %31 = vector.load %arg15[%c0_20, %c0_21] : memref<1x128xf32, #tpu.memory_space<vmem>>, vector<1x128xf32>
      %c0_22 = arith.constant 0 : index
      %c0_23 = arith.constant 0 : index
      %32 = vector.load %arg9[%c0_22, %c0_23] : memref<1x128xf32, #tpu.memory_space<vmem>>, vector<1x128xf32>
      %33 = arith.mulf %31, %32 : vector<1x128xf32>
      %34 = arith.addf %30, %33 : vector<1x128xf32>
      %c0_24 = arith.constant 0 : index
      %c0_25 = arith.constant 0 : index
      %35 = vector.load %arg13[%c0_24, %c0_25] : memref<16x128xf32, #tpu.memory_space<vmem>>, vector<16x128xf32>
      %36 = vector.broadcast %34 : vector<1x128xf32> to vector<16x128xf32>
      %37 = arith.addf %35, %36 : vector<16x128xf32>
      %c0_26 = arith.constant 0 : index
      %c0_27 = arith.constant 0 : index
      %38 = vector.load %arg10[%c0_26, %c0_27] : memref<16x128xf32, #tpu.memory_space<vmem>>, vector<16x128xf32>
      tpu.vector_store %arg10[%c0_26, %c0_27], %37 {strides = array<i32>} : memref<16x128xf32, #tpu.memory_space<vmem>>, vector<16x128xf32>,
      %c0_28 = arith.constant 0 : index
      %39 = memref.load %arg14[%c0_28] : memref<2xf32, #tpu.memory_space<smem>>
      %c0_29 = arith.constant 0 : index
      %c0_30 = arith.constant 0 : index
      %40 = memref.load %arg11[%c0_29, %c0_30] : memref<1x1xf32, #tpu.memory_space<smem>>
      memref.store %39, %arg11[%c0_29, %c0_30] : memref<1x1xf32, #tpu.memory_space<smem>>
      %c1 = arith.constant 1 : index
      %41 = memref.load %arg14[%c1] : memref<2xf32, #tpu.memory_space<smem>>
      %c0_31 = arith.constant 0 : index
      %c0_32 = arith.constant 0 : index
      %42 = memref.load %arg12[%c0_31, %c0_32] : memref<1x1xf32, #tpu.memory_space<smem>>
      memref.store %41, %arg12[%c0_31, %c0_32] : memref<1x1xf32, #tpu.memory_space<smem>>
    } else {
    }
    return
  }
  func.func @transform_0(%arg0: i32, %arg1: i32, %arg2: i32) -> (i32, i32) {
    %c0_i32 = arith.constant 0 : i32
    return %arg0, %arg2 : i32, i32
  }
  func.func @transform_1(%arg0: i32, %arg1: i32, %arg2: i32) -> (i32, i32) {
    %c0_i32 = arith.constant 0 : i32
    return %arg2, %arg1 : i32, i32
  }
  func.func @transform_2(%arg0: i32, %arg1: i32, %arg2: i32) -> (i32, i32) {
    %c0_i32 = arith.constant 0 : i32
    return %arg2, %arg1 : i32, i32
  }
  func.func @transform_3(%arg0: i32, %arg1: i32, %arg2: i32) -> (i32, i32) {
    %c0_i32 = arith.constant 0 : i32
    return %arg2, %arg1 : i32, i32
  }
  func.func @transform_4(%arg0: i32, %arg1: i32, %arg2: i32) -> (i32, i32) {
    %c0_i32 = arith.constant 0 : i32
    %c0_i32_0 = arith.constant 0 : i32
    return %c0_i32, %arg1 : i32, i32
  }
  func.func @transform_5(%arg0: i32, %arg1: i32, %arg2: i32) -> (i32, i32) {
    %c0_i32 = arith.constant 0 : i32
    %c0_i32_0 = arith.constant 0 : i32
    return %c0_i32, %arg1 : i32, i32
  }
  func.func @transform_6(%arg0: i32, %arg1: i32, %arg2: i32) -> (i32, i32) {
    %c0_i32 = arith.constant 0 : i32
    %c0_i32_0 = arith.constant 0 : i32
    return %c0_i32, %arg1 : i32, i32
  }
  func.func @transform_7(%arg0: i32, %arg1: i32, %arg2: i32) -> (i32, i32) {
    %c0_i32 = arith.constant 0 : i32
    return %arg0, %arg1 : i32, i32
  }
  func.func @transform_8(%arg0: i32, %arg1: i32, %arg2: i32) -> (i32, i32) {
    %c0_i32 = arith.constant 0 : i32
    return %arg0, %arg1 : i32, i32
  }
  func.func @transform_9(%arg0: i32, %arg1: i32, %arg2: i32) -> (i32, i32) {
    %c0_i32 = arith.constant 0 : i32
    return %arg0, %arg1 : i32, i32
  }
}

</mosaic_0001>

<llo_original>
// kernel: tpu_custom_call.1
$region0: #{tpu_custom_call.1}
  #allocation0 [shape = 'u32[]', space=smem, size = 0x4, offset = 0x4, fixed_abs, tag = 'smem constant byte address 0x4 - core index']
  #allocation1 [shape = 'u32[72,128]{1,0:T(1,128)}', space=vmem, size = 0x9000, scoped, tag = 'internal scratch']
  #allocation2 [shape = 'f32[16,128]{1,0:T(8,128)}', space=vmem, size = 0x2000, scoped, tag = 'scratch operand']
  #allocation3 [shape = 'f32[2]{0:T(128)}', space=smem, size = 0x200, scoped, tag = 'scratch operand']
  #allocation4 [shape = 'f32[1,128]{1,0:T(1,128)}', space=vmem, size = 0x200, scoped, tag = 'scratch operand']
  %s0 = inlined_call_operand.hbm [shape: bf16[16,128], index: 0, kind: input, shape index: {}]
  %s1 = inlined_call_operand.hbm [shape: bf16[128,128], index: 1, kind: input, shape index: {}]
  %s2 = inlined_call_operand.hbm [shape: bf16[128,128], index: 2, kind: input, shape index: {}]
  %s3 = inlined_call_operand.hbm [shape: bf16[128,128], index: 3, kind: input, shape index: {}]
  %s4 = inlined_call_operand.vmem [shape: f32[1,128], index: 4, kind: input, shape index: {}]
  %s5 = inlined_call_operand.vmem [shape: f32[1,128], index: 5, kind: input, shape index: {}]
  %s6 = inlined_call_operand.vmem [shape: f32[1,128], index: 6, kind: input, shape index: {}]
  %s7 = inlined_call_operand.hbm [shape: f32[16,128], index: 7, kind: output, shape index: {0}]
  %s8 = inlined_call_operand.hbm [shape: f32[1,1], index: 8, kind: output, shape index: {1}]
  %s9 = inlined_call_operand.hbm [shape: f32[1,1], index: 9, kind: output, shape index: {2}]
  %10 = xla_tuple %s7, %s8, %s9
  %s11 = sld [smem:[#allocation0]]
  $region86: #{tpu_custom_call.1} parent=0
    _
  %s13 = ssub.s32 1, %s11
  %s14 = scalar_select 0, %s13, %s11
  $region1: #{tpu_custom_call.1} parent=0
    #allocation5 [shape = 'u8[4096]{0}', space=vmem, size = 0x1000, scoped, tag = 'input window, operand 0, single buffered']
    #allocation6 [shape = 's32[1]{0}', space=sflag, size = 0x4, scoped, tag = 'scoped memory for tpu_custom_call.1']
    #allocation7 [shape = 's32[1]{0}', space=sflag, size = 0x4, scoped, tag = 'scoped memory for tpu_custom_call.1']
    #allocation8 [shape = 's32[1]{0}', space=sflag, size = 0x4, scoped, tag = 'scoped memory for tpu_custom_call.1']
    #allocation9 [shape = 'u8[32768]{0}', space=vmem, size = 0x8000, scoped, tag = 'input window, operand 1, single buffered']
    #allocation10 [shape = 's32[1]{0}', space=sflag, size = 0x4, scoped, tag = 'scoped memory for tpu_custom_call.1']
    #allocation11 [shape = 'u8[32768]{0}', space=vmem, size = 0x8000, scoped, tag = 'input window, operand 2, single buffered']
    #allocation12 [shape = 'u8[32768]{0}', space=vmem, size = 0x8000, scoped, tag = 'input window, operand 3, single buffered']
    #allocation13 [shape = 's32[1]{0}', space=sflag, size = 0x4, scoped, tag = 'scoped memory for tpu_custom_call.1']
    #allocation14 [shape = 'u8[8192]{0}', space=vmem, size = 0x2000, scoped, tag = 'output window, operand 0, single buffered']
    #allocation15 [shape = 'u8[512]{0}', space=smem, size = 0x200, scoped, tag = 'output window, operand 1, single buffered']
    #allocation16 [shape = 'u8[512]{0}', space=smem, size = 0x200, scoped, tag = 'output window, operand 2, single buffered']
    #allocation17 [shape = 's32[1]{0}', space=sflag, size = 0x4, scoped, tag = 'scoped memory for tpu_custom_call.1']
    %15 = vsyncpa [#allocation6], 0
    %16 = vsyncpa [#allocation10], 0
    %17 = vsyncpa [#allocation13], 0
    %18 = vsyncpa [#allocation7], 0
    %19 = vsyncpa [#allocation8], 0
    %20 = vsyncpa [#allocation17], 0
    // Predicated region
    $region2: #{tpu_custom_call.1} parent=1 // pred_check
      _
    $region3: #{tpu_custom_call.1} parent=1 // pred_check_branch
      %22 = sbr.rel (0) target = $region5
    $region4: #{tpu_custom_call.1} parent=1 // pred_region
      %24 = vsyncadd [#allocation6], 0
      %s25 = sshll.u32 %s0, 4
      %s26 = int_to_ptr.hbm [resolvable:$true] %s25
      %s27 = sshll.u32 [#allocation5], 4
      %s28 = int_to_ptr.vmem [resolvable:$true] %s27
      %33 = dma.hbm_to_vmem [thread:$0]  %s26, 128, %s28, [#allocation6], 64, 64, 4
    $region5: #{tpu_custom_call.1} parent=1 // pred_fallthru
      _
    // Predicated region
    $region6: #{tpu_custom_call.1} parent=1 // pred_check
      _
    $region7: #{tpu_custom_call.1} parent=1 // pred_check_branch
      %35 = sbr.rel (0) target = $region9
    $region8: #{tpu_custom_call.1} parent=1 // pred_region
      %37 = vsyncadd [#allocation10], 0
      %s38 = sshll.u32 %s1, 4
      %s39 = int_to_ptr.hbm [resolvable:$true] %s38
      %s40 = sshll.u32 [#allocation9], 4
      %s41 = int_to_ptr.vmem [resolvable:$true] %s40
      %46 = dma.hbm_to_vmem [thread:$0]  %s39, 1024, %s41, [#allocation10], 64, 64, 4
    $region9: #{tpu_custom_call.1} parent=1 // pred_fallthru
      _
    // Predicated region
    $region10: #{tpu_custom_call.1} parent=1 // pred_check
      _
    $region11: #{tpu_custom_call.1} parent=1 // pred_check_branch
      %48 = sbr.rel (0) target = $region13
    $region12: #{tpu_custom_call.1} parent=1 // pred_region
      %50 = vsyncadd [#allocation10], 0
      %s51 = sshll.u32 %s2, 4
      %s52 = int_to_ptr.hbm [resolvable:$true] %s51
      %s53 = sshll.u32 [#allocation11], 4
      %s54 = int_to_ptr.vmem [resolvable:$true] %s53
      %59 = dma.hbm_to_vmem [thread:$0]  %s52, 1024, %s54, [#allocation10], 64, 64, 4
    $region13: #{tpu_custom_call.1} parent=1 // pred_fallthru
      _
    // Predicated region
    $region14: #{tpu_custom_call.1} parent=1 // pred_check
      _
    $region15: #{tpu_custom_call.1} parent=1 // pred_check_branch
      %61 = sbr.rel (0) target = $region17
    $region16: #{tpu_custom_call.1} parent=1 // pred_region
      %63 = vsyncadd [#allocation13], 0
      %s64 = sshll.u32 %s3, 4
      %s65 = int_to_ptr.hbm [resolvable:$true] %s64
      %s66 = sshll.u32 [#allocation12], 4
      %s67 = int_to_ptr.vmem [resolvable:$true] %s66
      %72 = dma.hbm_to_vmem [thread:$0]  %s65, 1024, %s67, [#allocation13], 64, 64, 4
    $region17: #{tpu_custom_call.1} parent=1 // pred_fallthru
      _
    // Predicated region
    $region18: #{tpu_custom_call.1} parent=1 // pred_check
      _
    $region19: #{tpu_custom_call.1} parent=1 // pred_check_branch
      %74 = sbr.rel (0) target = $region21
    $region20: #{tpu_custom_call.1} parent=1 // pred_region
      _
    $region21: #{tpu_custom_call.1} parent=1 // pred_fallthru
      _
    // Predicated region
    $region22: #{tpu_custom_call.1} parent=1 // pred_check
      _
    $region23: #{tpu_custom_call.1} parent=1 // pred_check_branch
      %76 = sbr.rel (0) target = $region25
    $region24: #{tpu_custom_call.1} parent=1 // pred_region
      _
    $region25: #{tpu_custom_call.1} parent=1 // pred_fallthru
      _
    // Predicated region
    $region26: #{tpu_custom_call.1} parent=1 // pred_check
      _
    $region27: #{tpu_custom_call.1} parent=1 // pred_check_branch
      %78 = sbr.rel (0) target = $region29
    $region28: #{tpu_custom_call.1} parent=1 // pred_region
      _
    $region29: #{tpu_custom_call.1} parent=1 // pred_fallthru
      _
    // Predicated region
    $region30: #{tpu_custom_call.1} parent=1 // pred_check
      _
    $region31: #{tpu_custom_call.1} parent=1 // pred_check_branch
      %80 = sbr.rel (0) target = $region33
    $region32: #{tpu_custom_call.1} parent=1 // pred_region
      %82 = dma.done [#allocation6], 128
    $region33: #{tpu_custom_call.1} parent=1 // pred_fallthru
      _
    // Predicated region
    $region34: #{tpu_custom_call.1} parent=1 // pred_check
      _
    $region35: #{tpu_custom_call.1} parent=1 // pred_check_branch
      %84 = sbr.rel (0) target = $region37
    $region36: #{tpu_custom_call.1} parent=1 // pred_region
      %86 = dma.done [#allocation10], 1024
    $region37: #{tpu_custom_call.1} parent=1 // pred_fallthru
      _
    // Predicated region
    $region38: #{tpu_custom_call.1} parent=1 // pred_check
      _
    $region39: #{tpu_custom_call.1} parent=1 // pred_check_branch
      %88 = sbr.rel (0) target = $region41
    $region40: #{tpu_custom_call.1} parent=1 // pred_region
      %90 = dma.done [#allocation10], 1024
    $region41: #{tpu_custom_call.1} parent=1 // pred_fallthru
      _
    // Predicated region
    $region42: #{tpu_custom_call.1} parent=1 // pred_check
      _
    $region43: #{tpu_custom_call.1} parent=1 // pred_check_branch
      %92 = sbr.rel (0) target = $region45
    $region44: #{tpu_custom_call.1} parent=1 // pred_region
      %94 = dma.done [#allocation13], 1024
    $region45: #{tpu_custom_call.1} parent=1 // pred_fallthru
      _
    %p95 = scmp.eq.s32.totalorder 0, 0
    // Predicated region
    $region46: #{tpu_custom_call.1} parent=1 // pred_check
      %p96 = pneg %p95
    $region47: #{tpu_custom_call.1} parent=1 // pred_check_branch
      %98 = sbr.rel (%p96) target = $region49
    $region48: #{tpu_custom_call.1} parent=1 // pred_region
      %99 = vst [vmem:[#allocation2] sm:$0xff] 0.0
      %100 = vst [vmem:[#allocation2 + $0x8] sm:$0xff] 0.0
      %s101 = scalar_lea.smem [#allocation3], 0
      %102 = sst [smem:[%s101]] 0.0
      %s103 = scalar_lea.smem [#allocation3], 1
      %104 = sst [smem:[%s103]] 0.0
      %v105 = vld [vmem:[%s5] sm:$0x1]
      %vm106 = vcmp.gt.f32.partialorder %v105, 20.0
      %v107 = vmul.f32 %v105, 1.442695
      %v108 = vpow.pop %v107
      %v109 = vadd.f32 %v108, 1.0
      %v110 = vlog2.pop %v109
      %v111 = vmul.f32 %v110, 0.6931472
      %v112 = vmul.f32 -0.5, %v108
      %v113 = vadd.f32 %v112, 1.0
      %v114 = vmul.f32 %v113, %v108
      %v115 = vand.u32 2147483647, %v108
      %vm116 = vcmp.lt.f32.partialorder %v115, 0.0004427343
      %v117 = vsel %vm116, %v114, %v111
      %v118 = vsel %vm106, %v105, %v117
      %v119 = vadd.f32 %v118, 1e-06
      %120 = vst [vmem:[#allocation4] sm:$0x1] %v119
    $region49: #{tpu_custom_call.1} parent=1 // pred_fallthru
      _
    %v121 = vld [vmem:[#allocation9] sm:$0xf]
    %v122 = vld [vmem:[#allocation9 + $0x4] sm:$0xf]
    %v123 = vld [vmem:[#allocation9 + $0x8] sm:$0xf]
    %v124 = vld [vmem:[#allocation9 + $0xc] sm:$0xf]
    %v125 = vld [vmem:[#allocation9 + $0x10] sm:$0xf]
    %v126 = vld [vmem:[#allocation9 + $0x14] sm:$0xf]
    %v127 = vld [vmem:[#allocation9 + $0x18] sm:$0xf]
    %v128 = vld [vmem:[#allocation9 + $0x1c] sm:$0xf]
    %v129 = vld [vmem:[#allocation9 + $0x20] sm:$0xf]
    %v130 = vld [vmem:[#allocation9 + $0x24] sm:$0xf]
    %v131 = vld [vmem:[#allocation9 + $0x28] sm:$0xf]
    %v132 = vld [vmem:[#allocation9 + $0x2c] sm:$0xf]
    %v133 = vld [vmem:[#allocation9 + $0x30] sm:$0xf]
    %v134 = vld [vmem:[#allocation9 + $0x34] sm:$0xf]
    %v135 = vld [vmem:[#allocation9 + $0x38] sm:$0xf]
    %v136 = vld [vmem:[#allocation9 + $0x3c] sm:$0xf]
    %v137 = vunpack.c.l.bf16 %v121
    %v138 = vunpack.c.l.bf16 %v122
    %v139 = vunpack.c.l.bf16 %v123
    %v140 = vunpack.c.l.bf16 %v124
    %v141 = vunpack.c.l.bf16 %v125
    %v142 = vunpack.c.l.bf16 %v126
    %v143 = vunpack.c.l.bf16 %v127
    %v144 = vunpack.c.l.bf16 %v128
    %v145 = vunpack.c.l.bf16 %v129
    %v146 = vunpack.c.l.bf16 %v130
    %v147 = vunpack.c.l.bf16 %v131
    %v148 = vunpack.c.l.bf16 %v132
    %v149 = vunpack.c.l.bf16 %v133
    %v150 = vunpack.c.l.bf16 %v134
    %v151 = vunpack.c.l.bf16 %v135
    %v152 = vunpack.c.l.bf16 %v136
    %v153 = vld [vmem:[#allocation11] sm:$0xf]
    %v154 = vld [vmem:[#allocation11 + $0x4] sm:$0xf]
    %v155 = vld [vmem:[#allocation11 + $0x8] sm:$0xf]
    %v156 = vld [vmem:[#allocation11 + $0xc] sm:$0xf]
    %v157 = vld [vmem:[#allocation11 + $0x10] sm:$0xf]
    %v158 = vld [vmem:[#allocation11 + $0x14] sm:$0xf]
    %v159 = vld [vmem:[#allocation11 + $0x18] sm:$0xf]
    %v160 = vld [vmem:[#allocation11 + $0x1c] sm:$0xf]
    %v161 = vld [vmem:[#allocation11 + $0x20] sm:$0xf]
    %v162 = vld [vmem:[#allocation11 + $0x24] sm:$0xf]
    %v163 = vld [vmem:[#allocation11 + $0x28] sm:$0xf]
    %v164 = vld [vmem:[#allocation11 + $0x2c] sm:$0xf]
    %v165 = vld [vmem:[#allocation11 + $0x30] sm:$0xf]
    %v166 = vld [vmem:[#allocation11 + $0x34] sm:$0xf]
    %v167 = vld [vmem:[#allocation11 + $0x38] sm:$0xf]
    %v168 = vld [vmem:[#allocation11 + $0x3c] sm:$0xf]
    %v169 = vunpack.c.l.bf16 %v153
    %v170 = vunpack.c.l.bf16 %v154
    %v171 = vunpack.c.l.bf16 %v155
    %v172 = vunpack.c.l.bf16 %v156
    %v173 = vunpack.c.l.bf16 %v157
    %v174 = vunpack.c.l.bf16 %v158
    %v175 = vunpack.c.l.bf16 %v159
    %v176 = vunpack.c.l.bf16 %v160
    %v177 = vunpack.c.l.bf16 %v161
    %v178 = vunpack.c.l.bf16 %v162
    %v179 = vunpack.c.l.bf16 %v163
    %v180 = vunpack.c.l.bf16 %v164
    %v181 = vunpack.c.l.bf16 %v165
    %v182 = vunpack.c.l.bf16 %v166
    %v183 = vunpack.c.l.bf16 %v167
    %v184 = vunpack.c.l.bf16 %v168
    %vm185 = vcmp.gt.f32.partialorder %v169, 20.0
    %vm186 = vcmp.gt.f32.partialorder %v170, 20.0
    %vm187 = vcmp.gt.f32.partialorder %v171, 20.0
    %vm188 = vcmp.gt.f32.partialorder %v172, 20.0
    %vm189 = vcmp.gt.f32.partialorder %v173, 20.0
    %vm190 = vcmp.gt.f32.partialorder %v174, 20.0
    %vm191 = vcmp.gt.f32.partialorder %v175, 20.0
    %vm192 = vcmp.gt.f32.partialorder %v176, 20.0
    %vm193 = vcmp.gt.f32.partialorder %v177, 20.0
    %vm194 = vcmp.gt.f32.partialorder %v178, 20.0
    %vm195 = vcmp.gt.f32.partialorder %v179, 20.0
    %vm196 = vcmp.gt.f32.partialorder %v180, 20.0
    %vm197 = vcmp.gt.f32.partialorder %v181, 20.0
    %vm198 = vcmp.gt.f32.partialorder %v182, 20.0
    %vm199 = vcmp.gt.f32.partialorder %v183, 20.0
    %vm200 = vcmp.gt.f32.partialorder %v184, 20.0
    %v201 = vmul.f32 %v169, 1.442695
    %v202 = vpow.pop %v201
    %v203 = vmul.f32 %v170, 1.442695
    %v204 = vpow.pop %v203
    %v205 = vmul.f32 %v171, 1.442695
    %v206 = vpow.pop %v205
    %v207 = vmul.f32 %v172, 1.442695
    %v208 = vpow.pop %v207
    %v209 = vmul.f32 %v173, 1.442695
    %v210 = vpow.pop %v209
    %v211 = vmul.f32 %v174, 1.442695
    %v212 = vpow.pop %v211
    %v213 = vmul.f32 %v175, 1.442695
    %v214 = vpow.pop %v213
    %v215 = vmul.f32 %v176, 1.442695
    %v216 = vpow.pop %v215
    %v217 = vmul.f32 %v177, 1.442695
    %v218 = vpow.pop %v217
    %v219 = vmul.f32 %v178, 1.442695
    %v220 = vpow.pop %v219
    %v221 = vmul.f32 %v179, 1.442695
    %v222 = vpow.pop %v221
    %v223 = vmul.f32 %v180, 1.442695
    %v224 = vpow.pop %v223
    %v225 = vmul.f32 %v181, 1.442695
    %v226 = vpow.pop %v225
    %v227 = vmul.f32 %v182, 1.442695
    %v228 = vpow.pop %v227
    %v229 = vmul.f32 %v183, 1.442695
    %v230 = vpow.pop %v229
    %v231 = vmul.f32 %v184, 1.442695
    %v232 = vpow.pop %v231
    %v233 = vadd.f32 %v202, 1.0
    %v234 = vlog2.pop %v233
    %v235 = vmul.f32 %v234, 0.6931472
    %v236 = vmul.f32 -0.5, %v202
    %v237 = vadd.f32 %v236, 1.0
    %v238 = vmul.f32 %v237, %v202
    %v239 = vand.u32 2147483647, %v202
    %vm240 = vcmp.lt.f32.partialorder %v239, 0.0004427343
    %v241 = vsel %vm240, %v238, %v235
    %v242 = vadd.f32 %v204, 1.0
    %v243 = vlog2.pop %v242
    %v244 = vmul.f32 %v243, 0.6931472
    %v245 = vmul.f32 -0.5, %v204
    %v246 = vadd.f32 %v245, 1.0
    %v247 = vmul.f32 %v246, %v204
    %v248 = vand.u32 2147483647, %v204
    %vm249 = vcmp.lt.f32.partialorder %v248, 0.0004427343
    %v250 = vsel %vm249, %v247, %v244
    %v251 = vadd.f32 %v206, 1.0
    %v252 = vlog2.pop %v251
    %v253 = vmul.f32 %v252, 0.6931472
    %v254 = vmul.f32 -0.5, %v206
    %v255 = vadd.f32 %v254, 1.0
    %v256 = vmul.f32 %v255, %v206
    %v257 = vand.u32 2147483647, %v206
    %vm258 = vcmp.lt.f32.partialorder %v257, 0.0004427343
    %v259 = vsel %vm258, %v256, %v253
    %v260 = vadd.f32 %v208, 1.0
    %v261 = vlog2.pop %v260
    %v262 = vmul.f32 %v261, 0.6931472
    %v263 = vmul.f32 -0.5, %v208
    %v264 = vadd.f32 %v263, 1.0
    %v265 = vmul.f32 %v264, %v208
    %v266 = vand.u32 2147483647, %v208
    %vm267 = vcmp.lt.f32.partialorder %v266, 0.0004427343
    %v268 = vsel %vm267, %v265, %v262
    %v269 = vadd.f32 %v210, 1.0
    %v270 = vlog2.pop %v269
    %v271 = vmul.f32 %v270, 0.6931472
    %v272 = vmul.f32 -0.5, %v210
    %v273 = vadd.f32 %v272, 1.0
    %v274 = vmul.f32 %v273, %v210
    %v275 = vand.u32 2147483647, %v210
    %vm276 = vcmp.lt.f32.partialorder %v275, 0.0004427343
    %v277 = vsel %vm276, %v274, %v271
    %v278 = vadd.f32 %v212, 1.0
    %v279 = vlog2.pop %v278
    %v280 = vmul.f32 %v279, 0.6931472
    %v281 = vmul.f32 -0.5, %v212
    %v282 = vadd.f32 %v281, 1.0
    %v283 = vmul.f32 %v282, %v212
    %v284 = vand.u32 2147483647, %v212
    %vm285 = vcmp.lt.f32.partialorder %v284, 0.0004427343
    %v286 = vsel %vm285, %v283, %v280
    %v287 = vadd.f32 %v214, 1.0
    %v288 = vlog2.pop %v287
    %v289 = vmul.f32 %v288, 0.6931472
    %v290 = vmul.f32 -0.5, %v214
    %v291 = vadd.f32 %v290, 1.0
    %v292 = vmul.f32 %v291, %v214
    %v293 = vand.u32 2147483647, %v214
    %vm294 = vcmp.lt.f32.partialorder %v293, 0.0004427343
    %v295 = vsel %vm294, %v292, %v289
    %v296 = vadd.f32 %v216, 1.0
    %v297 = vlog2.pop %v296
    %v298 = vmul.f32 %v297, 0.6931472
    %v299 = vmul.f32 -0.5, %v216
    %v300 = vadd.f32 %v299, 1.0
    %v301 = vmul.f32 %v300, %v216
    %v302 = vand.u32 2147483647, %v216
    %vm303 = vcmp.lt.f32.partialorder %v302, 0.0004427343
    %v304 = vsel %vm303, %v301, %v298
    %v305 = vadd.f32 %v218, 1.0
    %v306 = vlog2.pop %v305
    %v307 = vmul.f32 %v306, 0.6931472
    %v308 = vmul.f32 -0.5, %v218
    %v309 = vadd.f32 %v308, 1.0
    %v310 = vmul.f32 %v309, %v218
    %v311 = vand.u32 2147483647, %v218
    %vm312 = vcmp.lt.f32.partialorder %v311, 0.0004427343
    %v313 = vsel %vm312, %v310, %v307
    %v314 = vadd.f32 %v220, 1.0
    %v315 = vlog2.pop %v314
    %v316 = vmul.f32 %v315, 0.6931472
    %v317 = vmul.f32 -0.5, %v220
    %v318 = vadd.f32 %v317, 1.0
    %v319 = vmul.f32 %v318, %v220
    %v320 = vand.u32 2147483647, %v220
    %vm321 = vcmp.lt.f32.partialorder %v320, 0.0004427343
    %v322 = vsel %vm321, %v319, %v316
    %v323 = vadd.f32 %v222, 1.0
    %v324 = vlog2.pop %v323
    %v325 = vmul.f32 %v324, 0.6931472
    %v326 = vmul.f32 -0.5, %v222
    %v327 = vadd.f32 %v326, 1.0
    %v328 = vmul.f32 %v327, %v222
    %v329 = vand.u32 2147483647, %v222
    %vm330 = vcmp.lt.f32.partialorder %v329, 0.0004427343
    %v331 = vsel %vm330, %v328, %v325
    %v332 = vadd.f32 %v224, 1.0
    %v333 = vlog2.pop %v332
    %v334 = vmul.f32 %v333, 0.6931472
    %v335 = vmul.f32 -0.5, %v224
    %v336 = vadd.f32 %v335, 1.0
    %v337 = vmul.f32 %v336, %v224
    %v338 = vand.u32 2147483647, %v224
    %vm339 = vcmp.lt.f32.partialorder %v338, 0.0004427343
    %v340 = vsel %vm339, %v337, %v334
    %v341 = vadd.f32 %v226, 1.0
    %v342 = vlog2.pop %v341
    %v343 = vmul.f32 %v342, 0.6931472
    %v344 = vmul.f32 -0.5, %v226
    %v345 = vadd.f32 %v344, 1.0
    %v346 = vmul.f32 %v345, %v226
    %v347 = vand.u32 2147483647, %v226
    %vm348 = vcmp.lt.f32.partialorder %v347, 0.0004427343
    %v349 = vsel %vm348, %v346, %v343
    %v350 = vadd.f32 %v228, 1.0
    %v351 = vlog2.pop %v350
    %v352 = vmul.f32 %v351, 0.6931472
    %v353 = vmul.f32 -0.5, %v228
    %v354 = vadd.f32 %v353, 1.0
    %v355 = vmul.f32 %v354, %v228
    %v356 = vand.u32 2147483647, %v228
    %vm357 = vcmp.lt.f32.partialorder %v356, 0.0004427343
    %v358 = vsel %vm357, %v355, %v352
    %v359 = vadd.f32 %v230, 1.0
    %v360 = vlog2.pop %v359
    %v361 = vmul.f32 %v360, 0.6931472
    %v362 = vmul.f32 -0.5, %v230
    %v363 = vadd.f32 %v362, 1.0
    %v364 = vmul.f32 %v363, %v230
    %v365 = vand.u32 2147483647, %v230
    %vm366 = vcmp.lt.f32.partialorder %v365, 0.0004427343
    %v367 = vsel %vm366, %v364, %v361
    %v368 = vadd.f32 %v232, 1.0
    %v369 = vlog2.pop %v368
    %v370 = vmul.f32 %v369, 0.6931472
    %v371 = vmul.f32 -0.5, %v232
    %v372 = vadd.f32 %v371, 1.0
    %v373 = vmul.f32 %v372, %v232
    %v374 = vand.u32 2147483647, %v232
    %vm375 = vcmp.lt.f32.partialorder %v374, 0.0004427343
    %v376 = vsel %vm375, %v373, %v370
    %v377 = vsel %vm185, %v169, %v241
    %v378 = vsel %vm186, %v170, %v250
    %v379 = vsel %vm187, %v171, %v259
    %v380 = vsel %vm188, %v172, %v268
    %v381 = vsel %vm189, %v173, %v277
    %v382 = vsel %vm190, %v174, %v286
    %v383 = vsel %vm191, %v175, %v295
    %v384 = vsel %vm192, %v176, %v304
    %v385 = vsel %vm193, %v177, %v313
    %v386 = vsel %vm194, %v178, %v322
    %v387 = vsel %vm195, %v179, %v331
    %v388 = vsel %vm196, %v180, %v340
    %v389 = vsel %vm197, %v181, %v349
    %v390 = vsel %vm198, %v182, %v358
    %v391 = vsel %vm199, %v183, %v367
    %v392 = vsel %vm200, %v184, %v376
    %v393 = vadd.f32 %v377, 1e-06
    %v394 = vadd.f32 %v378, 1e-06
    %v395 = vadd.f32 %v379, 1e-06
    %v396 = vadd.f32 %v380, 1e-06
    %v397 = vadd.f32 %v381, 1e-06
    %v398 = vadd.f32 %v382, 1e-06
    %v399 = vadd.f32 %v383, 1e-06
    %v400 = vadd.f32 %v384, 1e-06
    %v401 = vadd.f32 %v385, 1e-06
    %v402 = vadd.f32 %v386, 1e-06
    %v403 = vadd.f32 %v387, 1e-06
    %v404 = vadd.f32 %v388, 1e-06
    %v405 = vadd.f32 %v389, 1e-06
    %v406 = vadd.f32 %v390, 1e-06
    %v407 = vadd.f32 %v391, 1e-06
    %v408 = vadd.f32 %v392, 1e-06
    %v409 = vld [vmem:[#allocation12] sm:$0xf]
    %v410 = vld [vmem:[#allocation12 + $0x4] sm:$0xf]
    %v411 = vld [vmem:[#allocation12 + $0x8] sm:$0xf]
    %v412 = vld [vmem:[#allocation12 + $0xc] sm:$0xf]
    %v413 = vld [vmem:[#allocation12 + $0x10] sm:$0xf]
    %v414 = vld [vmem:[#allocation12 + $0x14] sm:$0xf]
    %v415 = vld [vmem:[#allocation12 + $0x18] sm:$0xf]
    %v416 = vld [vmem:[#allocation12 + $0x1c] sm:$0xf]
    %v417 = vld [vmem:[#allocation12 + $0x20] sm:$0xf]
    %v418 = vld [vmem:[#allocation12 + $0x24] sm:$0xf]
    %v419 = vld [vmem:[#allocation12 + $0x28] sm:$0xf]
    %v420 = vld [vmem:[#allocation12 + $0x2c] sm:$0xf]
    %v421 = vld [vmem:[#allocation12 + $0x30] sm:$0xf]
    %v422 = vld [vmem:[#allocation12 + $0x34] sm:$0xf]
    %v423 = vld [vmem:[#allocation12 + $0x38] sm:$0xf]
    %v424 = vld [vmem:[#allocation12 + $0x3c] sm:$0xf]
    %v425 = vunpack.c.l.bf16 %v409
    %v426 = vunpack.c.l.bf16 %v410
    %v427 = vunpack.c.l.bf16 %v411
    %v428 = vunpack.c.l.bf16 %v412
    %v429 = vunpack.c.l.bf16 %v413
    %v430 = vunpack.c.l.bf16 %v414
    %v431 = vunpack.c.l.bf16 %v415
    %v432 = vunpack.c.l.bf16 %v416
    %v433 = vunpack.c.l.bf16 %v417
    %v434 = vunpack.c.l.bf16 %v418
    %v435 = vunpack.c.l.bf16 %v419
    %v436 = vunpack.c.l.bf16 %v420
    %v437 = vunpack.c.l.bf16 %v421
    %v438 = vunpack.c.l.bf16 %v422
    %v439 = vunpack.c.l.bf16 %v423
    %v440 = vunpack.c.l.bf16 %v424
    %v441 = vmul.f32 %v393, %v425
    %v442 = vmul.f32 %v394, %v426
    %v443 = vmul.f32 %v395, %v427
    %v444 = vmul.f32 %v396, %v428
    %v445 = vmul.f32 %v397, %v429
    %v446 = vmul.f32 %v398, %v430
    %v447 = vmul.f32 %v399, %v431
    %v448 = vmul.f32 %v400, %v432
    %v449 = vmul.f32 %v401, %v433
    %v450 = vmul.f32 %v402, %v434
    %v451 = vmul.f32 %v403, %v435
    %v452 = vmul.f32 %v404, %v436
    %v453 = vmul.f32 %v405, %v437
    %v454 = vmul.f32 %v406, %v438
    %v455 = vmul.f32 %v407, %v439
    %v456 = vmul.f32 %v408, %v440
    %v457 = vadd.f32 %v137, %v441
    %v458 = vadd.f32 %v138, %v442
    %v459 = vadd.f32 %v139, %v443
    %v460 = vadd.f32 %v140, %v444
    %v461 = vadd.f32 %v141, %v445
    %v462 = vadd.f32 %v142, %v446
    %v463 = vadd.f32 %v143, %v447
    %v464 = vadd.f32 %v144, %v448
    %v465 = vadd.f32 %v145, %v449
    %v466 = vadd.f32 %v146, %v450
    %v467 = vadd.f32 %v147, %v451
    %v468 = vadd.f32 %v148, %v452
    %v469 = vadd.f32 %v149, %v453
    %v470 = vadd.f32 %v150, %v454
    %v471 = vadd.f32 %v151, %v455
    %v472 = vadd.f32 %v152, %v456
    %v473 = vld [vmem:[#allocation2] sm:$0xff]
    %v474 = vld [vmem:[#allocation2 + $0x8] sm:$0xff]
    %v475 = vld [vmem:[#allocation5] sm:$0xf]
    %v476 = vld [vmem:[#allocation5 + $0x4] sm:$0xf]
    %v477 = vpack.c.bf16 %v458, %v457
    %v478 = vpack.c.bf16 %v460, %v459
    %v479 = vpack.c.bf16 %v462, %v461
    %v480 = vpack.c.bf16 %v464, %v463
    %v481 = vpack.c.bf16 %v466, %v465
    %v482 = vpack.c.bf16 %v468, %v467
    %v483 = vpack.c.bf16 %v470, %v469
    %v484 = vpack.c.bf16 %v472, %v471
    %v487 = vunpack.c.l.b16 %v475
    %v488 = vunpack.c.l.b16 %v476
    %v489 = vpack.c.b16 %v488, %v487
    %491 = vmatpush.bf16.msra.mxu0 %v484
    %492 = vmatpush.bf16.msra.mxu0 %v483
    %493 = vmatpush.bf16.msra.mxu0 %v482
    %494 = vmatpush.bf16.msra.mxu0 %v481
    %495 = vmatpush.bf16.msra.mxu0 %v480
    %496 = vmatpush.bf16.msra.mxu0 %v479
    %497 = vmatpush.bf16.msra.mxu0 %v478
    %498 = vmatpush.bf16.msra.mxu0 %v477
    %499 = vmatmul.bf16.gmra.mxu0 %v489
    %v500 = vpop.f32.mrf.mxu0
    %v501 = vadd.f32 0.0, %v500
    %v502 = vpop.f32.mrf.mxu0
    %v503 = vadd.f32 0.0, %v502
    %504 = vdwg.mxu0
    %v505 = vadd.f32 %v473, %v501
    %v506 = vadd.f32 %v474, %v503
    %507 = vst [vmem:[#allocation2] sm:$0xff] %v505
    %508 = vst [vmem:[#allocation2 + $0x8] sm:$0xff] %v506
    %p509 = scmp.eq.s32.totalorder 0, 0
    // Predicated region
    $region50: #{tpu_custom_call.1} parent=1 // pred_check
      %p510 = pneg %p509
    $region51: #{tpu_custom_call.1} parent=1 // pred_check_branch
      %512 = sbr.rel (%p510) target = $region53
    $region52: #{tpu_custom_call.1} parent=1 // pred_region
      %v513 = vlog2.pop %v393
      %v514 = vmul.f32 %v513, 0.6931472
      %v515 = vlog2.pop %v394
      %v516 = vmul.f32 %v515, 0.6931472
      %v517 = vlog2.pop %v395
      %v518 = vmul.f32 %v517, 0.6931472
      %v519 = vlog2.pop %v396
      %v520 = vmul.f32 %v519, 0.6931472
      %v521 = vlog2.pop %v397
      %v522 = vmul.f32 %v521, 0.6931472
      %v523 = vlog2.pop %v398
      %v524 = vmul.f32 %v523, 0.6931472
      %v525 = vlog2.pop %v399
      %v526 = vmul.f32 %v525, 0.6931472
      %v527 = vlog2.pop %v400
      %v528 = vmul.f32 %v527, 0.6931472
      %v529 = vlog2.pop %v401
      %v530 = vmul.f32 %v529, 0.6931472
      %v531 = vlog2.pop %v402
      %v532 = vmul.f32 %v531, 0.6931472
      %v533 = vlog2.pop %v403
      %v534 = vmul.f32 %v533, 0.6931472
      %v535 = vlog2.pop %v404
      %v536 = vmul.f32 %v535, 0.6931472
      %v537 = vlog2.pop %v405
      %v538 = vmul.f32 %v537, 0.6931472
      %v539 = vlog2.pop %v406
      %v540 = vmul.f32 %v539, 0.6931472
      %v541 = vlog2.pop %v407
      %v542 = vmul.f32 %v541, 0.6931472
      %v543 = vlog2.pop %v408
      %v544 = vmul.f32 %v543, 0.6931472
      %v545 = vsub.f32 -2.3025851, %v514
      %v546 = vsub.f32 -2.3025851, %v516
      %v547 = vsub.f32 -2.3025851, %v518
      %v548 = vsub.f32 -2.3025851, %v520
      %v549 = vsub.f32 -2.3025851, %v522
      %v550 = vsub.f32 -2.3025851, %v524
      %v551 = vsub.f32 -2.3025851, %v526
      %v552 = vsub.f32 -2.3025851, %v528
      %v553 = vsub.f32 -2.3025851, %v530
      %v554 = vsub.f32 -2.3025851, %v532
      %v555 = vsub.f32 -2.3025851, %v534
      %v556 = vsub.f32 -2.3025851, %v536
      %v557 = vsub.f32 -2.3025851, %v538
      %v558 = vsub.f32 -2.3025851, %v540
      %v559 = vsub.f32 -2.3025851, %v542
      %v560 = vsub.f32 -2.3025851, %v544
      %v561 = vmul.f32 %v393, %v393
      %v562 = vmul.f32 %v394, %v394
      %v563 = vmul.f32 %v395, %v395
      %v564 = vmul.f32 %v396, %v396
      %v565 = vmul.f32 %v397, %v397
      %v566 = vmul.f32 %v398, %v398
      %v567 = vmul.f32 %v399, %v399
      %v568 = vmul.f32 %v400, %v400
      %v569 = vmul.f32 %v401, %v401
      %v570 = vmul.f32 %v402, %v402
      %v571 = vmul.f32 %v403, %v403
      %v572 = vmul.f32 %v404, %v404
      %v573 = vmul.f32 %v405, %v405
      %v574 = vmul.f32 %v406, %v406
      %v575 = vmul.f32 %v407, %v407
      %v576 = vmul.f32 %v408, %v408
      %v577 = vmul.f32 %v137, %v137
      %v578 = vmul.f32 %v138, %v138
      %v579 = vmul.f32 %v139, %v139
      %v580 = vmul.f32 %v140, %v140
      %v581 = vmul.f32 %v141, %v141
      %v582 = vmul.f32 %v142, %v142
      %v583 = vmul.f32 %v143, %v143
      %v584 = vmul.f32 %v144, %v144
      %v585 = vmul.f32 %v145, %v145
      %v586 = vmul.f32 %v146, %v146
      %v587 = vmul.f32 %v147, %v147
      %v588 = vmul.f32 %v148, %v148
      %v589 = vmul.f32 %v149, %v149
      %v590 = vmul.f32 %v150, %v150
      %v591 = vmul.f32 %v151, %v151
      %v592 = vmul.f32 %v152, %v152
      %v593 = vadd.f32 %v561, %v577
      %v594 = vadd.f32 %v562, %v578
      %v595 = vadd.f32 %v563, %v579
      %v596 = vadd.f32 %v564, %v580
      %v597 = vadd.f32 %v565, %v581
      %v598 = vadd.f32 %v566, %v582
      %v599 = vadd.f32 %v567, %v583
      %v600 = vadd.f32 %v568, %v584
      %v601 = vadd.f32 %v569, %v585
      %v602 = vadd.f32 %v570, %v586
      %v603 = vadd.f32 %v571, %v587
      %v604 = vadd.f32 %v572, %v588
      %v605 = vadd.f32 %v573, %v589
      %v606 = vadd.f32 %v574, %v590
      %v607 = vadd.f32 %v575, %v591
      %v608 = vadd.f32 %v576, %v592
      %v609 = vmul.f32 %v593, 50.0
      %v610 = vmul.f32 %v594, 50.0
      %v611 = vmul.f32 %v595, 50.0
      %v612 = vmul.f32 %v596, 50.0
      %v613 = vmul.f32 %v597, 50.0
      %v614 = vmul.f32 %v598, 50.0
      %v615 = vmul.f32 %v599, 50.0
      %v616 = vmul.f32 %v600, 50.0
      %v617 = vmul.f32 %v601, 50.0
      %v618 = vmul.f32 %v602, 50.0
      %v619 = vmul.f32 %v603, 50.0
      %v620 = vmul.f32 %v604, 50.0
      %v621 = vmul.f32 %v605, 50.0
      %v622 = vmul.f32 %v606, 50.0
      %v623 = vmul.f32 %v607, 50.0
      %v624 = vmul.f32 %v608, 50.0
      %v625 = vadd.f32 %v545, %v609
      %v626 = vadd.f32 %v546, %v610
      %v627 = vadd.f32 %v547, %v611
      %v628 = vadd.f32 %v548, %v612
      %v629 = vadd.f32 %v549, %v613
      %v630 = vadd.f32 %v550, %v614
      %v631 = vadd.f32 %v551, %v615
      %v632 = vadd.f32 %v552, %v616
      %v633 = vadd.f32 %v553, %v617
      %v634 = vadd.f32 %v554, %v618
      %v635 = vadd.f32 %v555, %v619
      %v636 = vadd.f32 %v556, %v620
      %v637 = vadd.f32 %v557, %v621
      %v638 = vadd.f32 %v558, %v622
      %v639 = vadd.f32 %v559, %v623
      %v640 = vadd.f32 %v560, %v624
      %v641 = vsub.f32 %v625, 0.5
      %v642 = vsub.f32 %v626, 0.5
      %v643 = vsub.f32 %v627, 0.5
      %v644 = vsub.f32 %v628, 0.5
      %v645 = vsub.f32 %v629, 0.5
      %v646 = vsub.f32 %v630, 0.5
      %v647 = vsub.f32 %v631, 0.5
      %v648 = vsub.f32 %v632, 0.5
      %v649 = vsub.f32 %v633, 0.5
      %v650 = vsub.f32 %v634, 0.5
      %v651 = vsub.f32 %v635, 0.5
      %v652 = vsub.f32 %v636, 0.5
      %v653 = vsub.f32 %v637, 0.5
      %v654 = vsub.f32 %v638, 0.5
      %v655 = vsub.f32 %v639, 0.5
      %v656 = vsub.f32 %v640, 0.5
      %v657 = vlaneseq
      %v658 = vshrl.u32 %v657, 7
      %v659 = vadd.s32 %v658, 8
      %v660 = vadd.s32 %v658, 16
      %v661 = vadd.s32 %v658, 24
      %v662 = vadd.s32 %v658, 32
      %v663 = vadd.s32 %v658, 40
      %v664 = vadd.s32 %v658, 48
      %v665 = vadd.s32 %v658, 56
      %v666 = vadd.s32 %v658, 64
      %v667 = vadd.s32 %v658, 72
      %v668 = vadd.s32 %v658, 80
      %v669 = vadd.s32 %v658, 88
      %v670 = vadd.s32 %v658, 96
      %v671 = vadd.s32 %v658, 104
      %v672 = vadd.s32 %v658, 112
      %v673 = vadd.s32 %v658, 120
      %s674 = smul.u32 0, 128
      %v675 = vstv %s674
      %v676 = vadd.s32 %v658, %v675
      %v677 = vadd.s32 %v659, %v675
      %v678 = vadd.s32 %v660, %v675
      %v679 = vadd.s32 %v661, %v675
      %v680 = vadd.s32 %v662, %v675
      %v681 = vadd.s32 %v663, %v675
      %v682 = vadd.s32 %v664, %v675
      %v683 = vadd.s32 %v665, %v675
      %v684 = vadd.s32 %v666, %v675
      %v685 = vadd.s32 %v667, %v675
      %v686 = vadd.s32 %v668, %v675
      %v687 = vadd.s32 %v669, %v675
      %v688 = vadd.s32 %v670, %v675
      %v689 = vadd.s32 %v671, %v675
      %v690 = vadd.s32 %v672, %v675
      %v691 = vadd.s32 %v673, %v675
      %vm692 = vcmp.lt.s32.totalorder %v676, 32
      %vm693 = vcmp.lt.s32.totalorder %v677, 32
      %vm694 = vcmp.lt.s32.totalorder %v678, 32
      %vm695 = vcmp.lt.s32.totalorder %v679, 32
      %vm696 = vcmp.lt.s32.totalorder %v680, 32
      %vm697 = vcmp.lt.s32.totalorder %v681, 32
      %vm698 = vcmp.lt.s32.totalorder %v682, 32
      %vm699 = vcmp.lt.s32.totalorder %v683, 32
      %vm700 = vcmp.lt.s32.totalorder %v684, 32
      %vm701 = vcmp.lt.s32.totalorder %v685, 32
      %vm702 = vcmp.lt.s32.totalorder %v686, 32
      %vm703 = vcmp.lt.s32.totalorder %v687, 32
      %vm704 = vcmp.lt.s32.totalorder %v688, 32
      %vm705 = vcmp.lt.s32.totalorder %v689, 32
      %vm706 = vcmp.lt.s32.totalorder %v690, 32
      %vm707 = vcmp.lt.s32.totalorder %v691, 32
      %v708 = vlaneseq
      %v709 = vand.u32 %v708, 127
      %s710 = smul.u32 0, 128
      %v711 = vstv %s710
      %v712 = vadd.s32 %v709, %v711
      %vm713 = vcmp.lt.s32.totalorder %v712, 32
      %vm714 = vmand %vm692, %vm713
      %vm715 = vmand %vm693, %vm713
      %vm716 = vmand %vm694, %vm713
      %vm717 = vmand %vm695, %vm713
      %vm718 = vmand %vm696, %vm713
      %vm719 = vmand %vm697, %vm713
      %vm720 = vmand %vm698, %vm713
      %vm721 = vmand %vm699, %vm713
      %vm722 = vmand %vm700, %vm713
      %vm723 = vmand %vm701, %vm713
      %vm724 = vmand %vm702, %vm713
      %vm725 = vmand %vm703, %vm713
      %vm726 = vmand %vm704, %vm713
      %vm727 = vmand %vm705, %vm713
      %vm728 = vmand %vm706, %vm713
      %vm729 = vmand %vm707, %vm713
      %v730 = vsel %vm714, %v641, 0.0
      %v731 = vsel %vm715, %v642, 0.0
      %v732 = vsel %vm716, %v643, 0.0
      %v733 = vsel %vm717, %v644, 0.0
      %v734 = vsel %vm718, %v645, 0.0
      %v735 = vsel %vm719, %v646, 0.0
      %v736 = vsel %vm720, %v647, 0.0
      %v737 = vsel %vm721, %v648, 0.0
      %v738 = vsel %vm722, %v649, 0.0
      %v739 = vsel %vm723, %v650, 0.0
      %v740 = vsel %vm724, %v651, 0.0
      %v741 = vsel %vm725, %v652, 0.0
      %v742 = vsel %vm726, %v653, 0.0
      %v743 = vsel %vm727, %v654, 0.0
      %v744 = vsel %vm728, %v655, 0.0
      %v745 = vsel %vm729, %v656, 0.0
      %s746 = sld [smem:[#allocation3]]
      %v747 = vadd.f32 %v730, %v731
      %v748 = vadd.f32 %v747, %v732
      %v749 = vadd.f32 %v748, %v733
      %v750 = vadd.f32 %v749, %v734
      %v751 = vadd.f32 %v750, %v735
      %v752 = vadd.f32 %v751, %v736
      %v753 = vadd.f32 %v752, %v737
      %v754 = vadd.f32 %v753, %v738
      %v755 = vadd.f32 %v754, %v739
      %v756 = vadd.f32 %v755, %v740
      %v757 = vadd.f32 %v756, %v741
      %v758 = vadd.f32 %v757, %v742
      %v759 = vadd.f32 %v758, %v743
      %v760 = vadd.f32 %v759, %v744
      %v761 = vadd.f32 %v760, %v745
      %762 = vadd.xlane.f32.xlu0 %v761
      %v763 = vpop.xlane.xlu0 %762
      %v764 = vrot.slane %v763, 4
      %v765 = vadd.f32 %v763, %v764
      %v766 = vrot.slane %v765, 2
      %v767 = vadd.f32 %v765, %v766
      %v768 = vrot.slane %v767, 1
      %v769 = vadd.f32 %v767, %v768
      %s770 = vtos %v769
      %s771 = sadd.f32 %s746, %s770
      %s772 = scalar_lea.smem [#allocation3], 0
      %773 = sst [smem:[%s772]] %s771
      // Predicated region
      $region54: #{tpu_custom_call.1} parent=52 // pred_check
        %p774 = pneg %p95
      $region55: #{tpu_custom_call.1} parent=52 // pred_check_branch
        %776 = sbr.rel (%p774) target = $region57
      $region56: #{tpu_custom_call.1} parent=52 // pred_region
        %v777 = vld [vmem:[%s4] sm:$0x1]
        %v778 = vld [vmem:[#allocation4] sm:$0x1]
        %v779 = vlog2.pop %v778
        %v780 = vmul.f32 %v779, 0.6931472
        %v781 = vsub.f32 -2.3025851, %v780
        %v782 = vmul.f32 %v778, %v778
        %v783 = vmul.f32 %v777, %v777
        %v784 = vadd.f32 %v782, %v783
        %v785 = vmul.f32 %v784, 50.0
        %v786 = vadd.f32 %v781, %v785
        %v787 = vsub.f32 %v786, 0.5
        %v788 = vsel %vm713, %v787, 0.0
        %s789 = sld [smem:[#allocation3 + $0x1]]
        %vm790 = vcmask 1040384
        %v791 = vsel %vm790, %v788, 0.0
        %792 = vadd.xlane.f32.xlu0 %v791
        %v793 = vpop.xlane.xlu0 %792
        %v794 = vrot.slane %v793, 4
        %v795 = vadd.f32 %v793, %v794
        %v796 = vrot.slane %v795, 2
        %v797 = vadd.f32 %v795, %v796
        %v798 = vrot.slane %v797, 1
        %v799 = vadd.f32 %v797, %v798
        %s800 = vtos %v799
        %s801 = sadd.f32 %s789, %s800
        %s802 = scalar_lea.smem [#allocation3], 1
        %803 = sst [smem:[%s802]] %s801
      $region57: #{tpu_custom_call.1} parent=52 // pred_fallthru
        _
    $region53: #{tpu_custom_call.1} parent=1 // pred_fallthru
      _
    // Predicated region
    $region58: #{tpu_custom_call.1} parent=1 // pred_check
      %p804 = pneg %p95
    $region59: #{tpu_custom_call.1} parent=1 // pred_check_branch
      %806 = sbr.rel (%p804) target = $region61
    $region60: #{tpu_custom_call.1} parent=1 // pred_region
      %v807 = vld [vmem:[%s4] sm:$0x1]
      %v808 = vld [vmem:[#allocation4] sm:$0x1]
      %v809 = vld [vmem:[%s6] sm:$0x1]
      %v810 = vmul.f32 %v808, %v809
      %v811 = vadd.f32 %v807, %v810
      %v812 = vld [vmem:[#allocation2] sm:$0xff]
      %v813 = vld [vmem:[#allocation2 + $0x8] sm:$0xff]
      %v815 = vperm.slane %v811, 0
      %v817 = vadd.f32 %v812, %v815
      %v818 = vadd.f32 %v813, %v815
      %819 = vst [vmem:[#allocation14] sm:$0xff] %v817
      %820 = vst [vmem:[#allocation14 + $0x8] sm:$0xff] %v818
      %s821 = sld [smem:[#allocation3]]
      %s822 = scalar_lea.smem [#allocation15], 0
      %823 = sst [smem:[%s822]] %s821
      %s824 = sld [smem:[#allocation3 + $0x1]]
      %s825 = scalar_lea.smem [#allocation16], 0
      %826 = sst [smem:[%s825]] %s824
    $region61: #{tpu_custom_call.1} parent=1 // pred_fallthru
      _
    // Predicated region
    $region62: #{tpu_custom_call.1} parent=1 // pred_check
      _
    $region63: #{tpu_custom_call.1} parent=1 // pred_check_branch
      %828 = sbr.rel (0) target = $region65
    $region64: #{tpu_custom_call.1} parent=1 // pred_region
      %830 = vsyncadd [#allocation7], 0
      %s831 = sshll.u32 [#allocation14], 4
      %s832 = int_to_ptr.vmem [resolvable:$true] %s831
      %s833 = sshll.u32 %s7, 4
      %s834 = int_to_ptr.hbm [resolvable:$true] %s833
      %839 = dma.vmem_to_hbm [thread:$0]  %s832, 256, %s834, [#allocation7], 128, 128, 8
    $region65: #{tpu_custom_call.1} parent=1 // pred_fallthru
      _
    // Predicated region
    $region66: #{tpu_custom_call.1} parent=1 // pred_check
      _
    $region67: #{tpu_custom_call.1} parent=1 // pred_check_branch
      %841 = sbr.rel (0) target = $region69
    $region68: #{tpu_custom_call.1} parent=1 // pred_region
      %843 = vsyncadd [#allocation8], 0
      %s845 = sshll.u32 %s8, 4
      %s846 = int_to_ptr.hbm [resolvable:$true] %s845
      %848 = dma.smem_to_hbm [#allocation15], 16, %s846, [#allocation8]
    $region69: #{tpu_custom_call.1} parent=1 // pred_fallthru
      _
    // Predicated region
    $region70: #{tpu_custom_call.1} parent=1 // pred_check
      _
    $region71: #{tpu_custom_call.1} parent=1 // pred_check_branch
      %850 = sbr.rel (0) target = $region73
    $region72: #{tpu_custom_call.1} parent=1 // pred_region
      %852 = vsyncadd [#allocation17], 0
      %s854 = sshll.u32 %s9, 4
      %s855 = int_to_ptr.hbm [resolvable:$true] %s854
      %857 = dma.smem_to_hbm [#allocation16], 16, %s855, [#allocation17]
    $region73: #{tpu_custom_call.1} parent=1 // pred_fallthru
      _
    // Predicated region
    $region74: #{tpu_custom_call.1} parent=1 // pred_check
      _
    $region75: #{tpu_custom_call.1} parent=1 // pred_check_branch
      %859 = sbr.rel (0) target = $region77
    $region76: #{tpu_custom_call.1} parent=1 // pred_region
      %861 = dma.done [#allocation7], 256
    $region77: #{tpu_custom_call.1} parent=1 // pred_fallthru
      _
    // Predicated region
    $region78: #{tpu_custom_call.1} parent=1 // pred_check
      _
    $region79: #{tpu_custom_call.1} parent=1 // pred_check_branch
      %863 = sbr.rel (0) target = $region81
    $region80: #{tpu_custom_call.1} parent=1 // pred_region
      %865 = dma.done [#allocation8], 16
    $region81: #{tpu_custom_call.1} parent=1 // pred_fallthru
      _
    // Predicated region
    $region82: #{tpu_custom_call.1} parent=1 // pred_check
      _
    $region83: #{tpu_custom_call.1} parent=1 // pred_check_branch
      %867 = sbr.rel (0) target = $region85
    $region84: #{tpu_custom_call.1} parent=1 // pred_region
      %869 = dma.done [#allocation17], 16
    $region85: #{tpu_custom_call.1} parent=1 // pred_fallthru
      _
    %870 = sfence
    %871 = vsyncpa [#allocation6], 1
    %872 = vsyncpa [#allocation10], 1
    %873 = vsyncpa [#allocation13], 1
    %874 = vsyncpa [#allocation7], 1
    %875 = vsyncpa [#allocation8], 1
    %876 = vsyncpa [#allocation17], 1

</llo_original>
